<compile_context>
chip_gen: v5e
topology: v5e:2x2
jax: 0.10.0
libtpu: 0.0.40
codegen_flags: <defaults>
</compile_context>

<pallas_src>
import functools

import jax
import jax.numpy as jnp
from jax import lax
from jax.experimental import pallas as pl
from jax.experimental.pallas import tpu as pltpu


# ----------------------------------------------------------------------------
# Kernel
# ----------------------------------------------------------------------------
def _logp_kernel(pred_ref, tgt_ref, out_ref, *, total_t, t_block, mask_t):
    """Per-block sum over batch rows of log_softmax(pred)[b, tgt[b, t], t].

    pred_ref: (BB, Q, TT) logits  (Q on sublanes, T on lanes)
    tgt_ref:  (BB, 1, TT) int32 class ids
    out_ref:  (1, 1, TT)  lane-dense per-time partial sums
    """
    x = pred_ref[...].astype(jnp.float32)                                   # (BB,Q,TT)
    tgt = tgt_ref[...]                                                      # (BB,1,TT)

    # Numerically-stable log-sum-exp over the class (sublane) axis.
    m = jnp.max(x, axis=1, keepdims=True)                                   # (BB,1,TT)
    lse = m + jnp.log(jnp.sum(jnp.exp(x - m), axis=1, keepdims=True))       # (BB,1,TT)

    # Gather x[b, tgt[b,t], t] via a one-hot mask on a sublane (class) iota.
    cls = lax.broadcasted_iota(jnp.int32, x.shape, 1)                       # (BB,Q,TT)
    picked = jnp.sum(jnp.where(cls == tgt, x, 0.0), axis=1, keepdims=True)  # (BB,1,TT)

    contrib = picked - lse                                                  # (BB,1,TT)
    if mask_t:
        # Last time block of the cdiv grid may read past T; zero that tail
        # (where() selects, so garbage/NaN in the padded lanes is harmless).
        t_idx = pl.program_id(2) * t_block + lax.broadcasted_iota(
            jnp.int32, contrib.shape, 2)
        contrib = jnp.where(t_idx < total_t, contrib, 0.0)

    # TODO(synk): on v7x (VPU-bound regime) the two sums over Q could be offloaded
    # to the otherwise-idle MXU via a ones-row dot_general; kept on the VPU until
    # verified to lower to vmatmul in the bundle dump.
    out_ref[0] = jnp.sum(contrib, axis=0)                                   # (1, TT)


# ----------------------------------------------------------------------------
# Tiling heuristics (generation-aware)
# ----------------------------------------------------------------------------
def _cdiv(a, b):
    return -(-a // b)


def _round_up(a, m):
    return _cdiv(a, m) * m


def _largest_divisor_leq(n, cap):
    d = max(1, min(n, cap))
    while n % d != 0:
        d -= 1
    return d


def _vmem_capacity_bytes():
    try:
        return int(pltpu.get_tpu_info().vmem_capacity_bytes)
    except Exception:
        return 64 << 20        # conservative (v7x-sized) fallback


def _choose_blocks(B, Q, T, itemsize, L):
    """Returns (bb, tt, n_t, vmem_limit_bytes)."""
    vmem = _vmem_capacity_bytes()
    if vmem >= (100 << 20):                       # v5e / v6e: 128 MiB VMEM
        target_bytes, vmem_limit = 12 << 20, 80 << 20
    else:                                         # v7x: 64 MiB VMEM
        target_bytes, vmem_limit = 4 << 20, 32 << 20

    col_bytes = Q * itemsize                      # bytes per (batch-row, time-column)

    if T < 128:
        # Small-T: single full-T lane block (block dim == full array dim is legal).
        tt = T
        bb = _largest_divisor_leq(B, max(1, target_bytes // max(1, col_bytes * tt)))
        n_t = 1
    else:
        t_floor = (T // 128) * 128                # largest multiple of 128 <= T
        tt_floor = min(512, t_floor)              # keep lanes at the roofline knee
        bb = _largest_divisor_leq(
            B, max(1, target_bytes // max(1, col_bytes * tt_floor)))
        if bb * col_bytes * T <= target_bytes:
            tt = T                                # whole time axis fits in one block
        else:
            tt_budget = (target_bytes // max(1, bb * col_bytes)) // 128 * 128
            tt = max(128, min(t_floor, tt_budget))
        n_t = _cdiv(T, tt)

    # v7x shards "parallel" grid axes over its 2 TensorCores: want >= 2 cells.
    if L * (B // bb) * n_t < 2:
        if T > 128:
            tt = max(128, _round_up(_cdiv(T, 2), 128))
            n_t = _cdiv(T, tt)
        elif B > 1:
            bb = _largest_divisor_leq(B, max(1, B // 2))

    return bb, tt, n_t, vmem_limit


# ----------------------------------------------------------------------------
# Wrapper (forward pass of SGVBLoss)
# ----------------------------------------------------------------------------
def sgvb_loss(quant_pred, target_wav, mu, sigma_sq, *,
              free_nats, anneal_weight, n_sam_per_datapoint):
    """quant_pred: (BL, Q, T) logits (native NCW layout); target_wav: (B, T) class ids;
    mu / sigma_sq: bottleneck parameters (any shape)."""
    BL, Q, T = quant_pred.shape
    L = n_sam_per_datapoint
    assert BL % L == 0
    B = BL // L
    assert target_wav.shape == (B, T)

    # Targets: single copy, no L-fold tiling; free host reshape to (B, 1, T).
    tgt = target_wav.astype(jnp.int32)[:, None, :]

    bb, tt, n_t, vmem_limit = _choose_blocks(B, Q, T, quant_pred.dtype.itemsize, L)
    n_b = B // bb
    t_pad = n_t * tt
    mask_t = (t_pad != T)

    kernel = functools.partial(_logp_kernel, total_t=T, t_block=tt, mask_t=mask_t)

    logp_partial = pl.pallas_call(
        kernel,
        out_shape=jax.ShapeDtypeStruct((L * n_b, 1, t_pad), jnp.float32),
        grid_spec=pltpu.PrefetchScalarGridSpec(
            num_scalar_prefetch=0,
            grid=(L, n_b, n_t),
            in_specs=[
                # pred block (i, b) covers batch rows [i*B + b*bb, i*B + (b+1)*bb),
                # which line up row-for-row with target batch-chunk b.
                pl.BlockSpec((bb, Q, tt), lambda i, b, j: (i * n_b + b, 0, j)),
                pl.BlockSpec((bb, 1, tt), lambda i, b, j: (b, 0, j)),
            ],
            out_specs=pl.BlockSpec((1, 1, tt), lambda i, b, j: (i * n_b + b, 0, j)),
        ),
        compiler_params=pltpu.CompilerParams(
            # No cross-step accumulators -> every axis parallel (v7x 2-TC sharding).
            dimension_semantics=("parallel", "parallel", "parallel"),
            vmem_limit_bytes=vmem_limit,
        ),
    )(quant_pred, tgt)

    # Scalar glue in JAX (mean, negation, free-nats clamp, anneal weighting).
    log_pred_loss = -(jnp.sum(logp_partial) / (BL * T))

    # Gaussian -KL term: trivially small reduction, kept in plain JAX per the
    # perf review (XLA fuses it; a dedicated pallas_call is pure launch overhead).
    mu_f = mu.astype(jnp.float32)
    ss_f = sigma_sq.astype(jnp.float32)
    neg_kl_div_gauss = 0.5 * jnp.sum(1.0 + jnp.log(ss_f) - mu_f * mu_f - ss_f)
    kl_div_loss = -neg_kl_div_gauss

    total_loss = log_pred_loss + anneal_weight * jnp.maximum(kl_div_loss, free_nats)
    return total_loss, kl_div_loss, log_pred_loss


# ----------------------------------------------------------------------------
# Pure-JAX reference mirroring the PyTorch forward
# ----------------------------------------------------------------------------
def _reference_loss(quant_pred, target_wav, mu, sigma_sq, *,
                    free_nats, anneal_weight, n_sam_per_datapoint):
    L = n_sam_per_datapoint
    log_pred = jax.nn.log_softmax(quant_pred, axis=1)                    # (BL, Q, T)
    tgt = jnp.tile(target_wav.astype(jnp.int32), (L, 1))[:, None, :]     # (BL, 1, T)
    gathered = jnp.take_along_axis(log_pred, tgt, axis=1)                # (BL, 1, T)
    log_pred_loss = -jnp.mean(gathered)
    neg_kl = 0.5 * jnp.sum(1.0 + jnp.log(sigma_sq) - mu * mu - sigma_sq)
    kl_div_loss = -neg_kl
    total = log_pred_loss + anneal_weight * jnp.maximum(kl_div_loss, free_nats)
    return total, kl_div_loss, log_pred_loss


if __name__ == "__main__":
    # Small synthetic shapes consistent with the module's forward.
    B, L = 2, 2                 # batch, bottleneck.n_sam_per_datapoint
    BL = B * L
    Q = 256                     # quantization classes (logsoftmax dim 1)
    T = 16                      # timesteps
    Z, Tz = 8, 16               # bottleneck latent channels / encoded timesteps
    free_nats = 0.1             # registered buffer value (constructor arg)
    anneal_weight = 0.5         # set via update_anneal_weight()

    key = jax.random.PRNGKey(0)
    k1, k2, k3, k4 = jax.random.split(key, 4)
    quant_pred = jax.random.normal(k1, (BL, Q, T), dtype=jnp.float32)
    target_wav = jax.random.randint(k2, (B, T), 0, Q, dtype=jnp.int32)
    mu = 0.5 * jax.random.normal(k3, (BL, Z, Tz), dtype=jnp.float32)
    sigma_sq = jnp.exp(0.2 * jax.random.normal(k4, (BL, Z, Tz), dtype=jnp.float32))

    total, kl, lp = sgvb_loss(
        quant_pred, target_wav, mu, sigma_sq,
        free_nats=free_nats, anneal_weight=anneal_weight,
        n_sam_per_datapoint=L)
    total = jax.block_until_ready(total)

    ref_total, ref_kl, ref_lp = _reference_loss(
        quant_pred, target_wav, mu, sigma_sq,
        free_nats=free_nats, anneal_weight=anneal_weight,
        n_sam_per_datapoint=L)

    assert jnp.allclose(total, ref_total, rtol=1e-5, atol=1e-5), (total, ref_total)
    assert jnp.allclose(kl, ref_kl, rtol=1e-5, atol=1e-5), (kl, ref_kl)
    assert jnp.allclose(lp, ref_lp, rtol=1e-5, atol=1e-5), (lp, ref_lp)
    print("KERNEL_OK")
</pallas_src>

<mosaic_0001>
module attributes {stable_mosaic.version = 11 : i64} {
  func.func @_logp_kernel(%arg0: i32, %arg1: i32, %arg2: i32, %arg3: memref<2x256x16xf32, #tpu.memory_space<vmem>>, %arg4: memref<2x1x16xi32, #tpu.memory_space<vmem>>, %arg5: memref<1x1x16xf32, #tpu.memory_space<vmem>>) attributes {dimension_semantics = [#tpu.dimension_semantics<parallel>, #tpu.dimension_semantics<parallel>, #tpu.dimension_semantics<parallel>], iteration_bounds = array<i64: 2, 1, 1>, scalar_prefetch = 0 : i64, scratch_operands = 0 : i64, tpu.core_type = #tpu.core_type<tc>, window_params = [{transform_indices = @transform_0, window_bounds = array<i64: 2, 256, 16>}, {transform_indices = @transform_1, window_bounds = array<i64: 2, 1, 16>}, {transform_indices = @transform_2, window_bounds = array<i64: 1, 1, 16>}]} {
    %c0 = arith.constant 0 : index
    %c0_0 = arith.constant 0 : index
    %c0_1 = arith.constant 0 : index
    %0 = vector.load %arg3[%c0, %c0_0, %c0_1] : memref<2x256x16xf32, #tpu.memory_space<vmem>>, vector<2x256x16xf32>
    %c0_2 = arith.constant 0 : index
    %c0_3 = arith.constant 0 : index
    %c0_4 = arith.constant 0 : index
    %1 = vector.load %arg4[%c0_2, %c0_3, %c0_4] : memref<2x1x16xi32, #tpu.memory_space<vmem>>, vector<2x1x16xi32>
    %cst = arith.constant dense<0xFF800000> : vector<2x16xf32>
    %2 = vector.multi_reduction <maximumf>, %0, %cst [1] : vector<2x256x16xf32> to vector<2x16xf32>
    %3 = vector.shape_cast %2 : vector<2x16xf32> to vector<2x1x16xf32>
    %4 = vector.broadcast %3 : vector<2x1x16xf32> to vector<2x256x16xf32>
    %5 = arith.subf %0, %4 : vector<2x256x16xf32>
    %6 = math.exp %5 : vector<2x256x16xf32>
    %cst_5 = arith.constant dense<0.000000e+00> : vector<2x16xf32>
    %7 = vector.multi_reduction <add>, %6, %cst_5 [1] : vector<2x256x16xf32> to vector<2x16xf32>
    %8 = vector.shape_cast %7 : vector<2x16xf32> to vector<2x1x16xf32>
    %9 = math.log %8 : vector<2x1x16xf32>
    %10 = arith.addf %3, %9 : vector<2x1x16xf32>
    %11 = tpu.iota {dimensions = array<i32: 1>} : vector<2x256x16xi32>
    %12 = vector.broadcast %1 : vector<2x1x16xi32> to vector<2x256x16xi32>
    %13 = arith.cmpi eq, %11, %12 : vector<2x256x16xi32>
    %cst_6 = arith.constant 0.000000e+00 : f32
    %14 = vector.broadcast %cst_6 : f32 to vector<2x256x16xf32>
    %15 = arith.select %13, %0, %14 : vector<2x256x16xi1>, vector<2x256x16xf32>
    %cst_7 = arith.constant dense<0.000000e+00> : vector<2x16xf32>
    %16 = vector.multi_reduction <add>, %15, %cst_7 [1] : vector<2x256x16xf32> to vector<2x16xf32>
    %17 = vector.shape_cast %16 : vector<2x16xf32> to vector<2x1x16xf32>
    %18 = arith.subf %17, %10 : vector<2x1x16xf32>
    %cst_8 = arith.constant dense<0.000000e+00> : vector<1x16xf32>
    %19 = vector.multi_reduction <add>, %18, %cst_8 [0] : vector<2x1x16xf32> to vector<1x16xf32>
    %c0_9 = arith.constant 0 : index
    %c0_10 = arith.constant 0 : index
    %c0_11 = arith.constant 0 : index
    %20 = vector.load %arg5[%c0_9, %c0_10, %c0_11] : memref<1x1x16xf32, #tpu.memory_space<vmem>>, vector<1x1x16xf32>
    %21 = vector.shape_cast %20 : vector<1x1x16xf32> to vector<1x16xf32>
    %22 = vector.shape_cast %19 : vector<1x16xf32> to vector<1x1x16xf32>
    tpu.vector_store %arg5[%c0_9, %c0_10, %c0_11], %22 {strides = array<i32>} : memref<1x1x16xf32, #tpu.memory_space<vmem>>, vector<1x1x16xf32>,
    return
  }
  func.func @transform_0(%arg0: i32, %arg1: i32, %arg2: i32) -> (i32, i32, i32) {
    %c1_i32 = arith.constant 1 : i32
    %0 = arith.muli %arg0, %c1_i32 : i32
    %1 = arith.addi %0, %arg1 : i32
    %c0_i32 = arith.constant 0 : i32
    %c0_i32_0 = arith.constant 0 : i32
    return %1, %c0_i32, %arg2 : i32, i32, i32
  }
  func.func @transform_1(%arg0: i32, %arg1: i32, %arg2: i32) -> (i32, i32, i32) {
    %c0_i32 = arith.constant 0 : i32
    %c0_i32_0 = arith.constant 0 : i32
    return %arg1, %c0_i32, %arg2 : i32, i32, i32
  }
  func.func @transform_2(%arg0: i32, %arg1: i32, %arg2: i32) -> (i32, i32, i32) {
    %c1_i32 = arith.constant 1 : i32
    %0 = arith.muli %arg0, %c1_i32 : i32
    %1 = arith.addi %0, %arg1 : i32
    %c0_i32 = arith.constant 0 : i32
    %c0_i32_0 = arith.constant 0 : i32
    return %1, %c0_i32, %arg2 : i32, i32, i32
  }
}

</mosaic_0001>

<llo_original>
// kernel: tpu_custom_call.1
$region0: #{tpu_custom_call.1}
  #allocation0 [shape = 'u32[]', space=smem, size = 0x4, offset = 0x4, fixed_abs, tag = 'smem constant byte address 0x4 - core index']
  #allocation1 [shape = 'u32[72,128]{1,0:T(1,128)}', space=vmem, size = 0x9000, scoped, tag = 'internal scratch']
  %s0 = inlined_call_operand.vmem [shape: f32[4,256,16], index: 0, kind: input, shape index: {}]
  %s1 = inlined_call_operand.vmem [shape: s32[2,1,16], index: 1, kind: input, shape index: {}]
  %s2 = inlined_call_operand.hbm [shape: f32[2,1,16], index: 2, kind: output, shape index: {}]
  %s3 = sld [smem:[#allocation0]]
  $region41: #{tpu_custom_call.1} parent=0
    _
  %s5 = ssub.s32 1, %s3
  %s6 = scalar_select 0, %s5, %s3
  $region1: #{tpu_custom_call.1} parent=0
    #allocation2 [shape = 'u8[1024]{0}', space=vmem, size = 0x400, scoped, tag = 'output window, operand 0']
    #allocation3 [shape = 's32[2]{0}', space=sflag, size = 0x8, scoped, tag = 'scoped memory for tpu_custom_call.1']
    %7 = vsyncpa [#allocation3], 0
    %s8 = scalar_lea.sflag [#allocation3], 1
    %9 = vsyncpa %s8, 0
    loop: start=0, step=1, limit=4
    $region2: #{tpu_custom_call.1} parent=1 // loop_pre_header
      _
    $region3: #{tpu_custom_call.1} parent=1 // loop_header
      %s11 = sphi 0, %s15
      %p12 = scmp.ge.s32.totalorder %s11, 4
      %s18 = sphi 0, %s37
      %s19 = sphi 0, %s33
      %s20 = sphi 0, %s29
      %s21 = sphi 0, %s18
      %s22 = sphi 0, %s19
      %s23 = sphi 0, %s20
      %s24 = sphi 0, %s21
      %s25 = sphi 0, %s22
      %s26 = sphi 0, %s23
      %s44 = sphi 0, %s46
      %s47 = sphi 0, %s44
      %s48 = sphi 0, %s47
      %s64 = sphi 0, %s48
      %s72 = sphi 0, %s74
      %s75 = sphi 0, %s72
      %s76 = sphi 0, %s75
      %s92 = sphi 0, %s76
      %s102 = sphi 0, %s104
      %s105 = sphi 0, %s102
      %s106 = sphi 0, %s105
      %s122 = sphi 0, %s106
    $region4: #{tpu_custom_call.1} parent=1 // loop_header_branch
      %14 = sbr.rel (%p12) target = $region8
    $region5: #{tpu_custom_call.1} parent=1 // loop_body
      %s16 = ssub.s32 %s11, 1
      %s17 = ssub.s32 %s11, 2
      %s27 = sadd.s32 1, %s20
      %p28 = scmp.ge.s32.totalorder %s27, 1
      %s29 = scalar_select %p28, 0, %s27
      %s30 = sadd.s32 1, %s19
      %s31 = scalar_select %p28, %s30, %s19
      %p32 = scmp.ge.s32.totalorder %s31, 1
      %s33 = scalar_select %p32, 0, %s31
      %s34 = sadd.s32 1, %s18
      %s35 = scalar_select %p32, %s34, %s18
      %p36 = scmp.ge.s32.totalorder %s35, 2
      %s37 = scalar_select %p36, 0, %s35
      %s38 = sadd.s32 %s18, %s19
      %s39 = sadd.s32 %s37, %s33
      %s40 = ssub.s32 %s38, %s39
      %s41 = ssub.s32 %s20, %s29
      %s42 = sor.u32 %s40, %s41
      %p43 = scmp.eq.s32.totalorder %s42, 0
      %s45 = sadd.s32 %s44, 1
      %s46 = scalar_select %p43, %s44, %s45
      %p49 = pneg %p43
      %p50 = scmp.eq.s32.totalorder %s11, 1
      %p51 = por %p49, %p50
      %p52 = scmp.ne.s32.totalorder %s44, %s47
      %p53 = scmp.eq.s32.totalorder %s11, 0
      %p54 = por %p52, %p53
      %p55 = scmp.ne.s32.totalorder %s44, %s47
      %p56 = scmp.eq.s32.totalorder %s16, 1
      %p57 = por %p55, %p56
      %p58 = scmp.ne.s32.totalorder %s47, %s48
      %p59 = scmp.eq.s32.totalorder %s16, 0
      %p60 = por %p58, %p59
      %p61 = scmp.ne.s32.totalorder %s47, %s48
      %p62 = scmp.eq.s32.totalorder %s17, 1
      %p63 = por %p61, %p62
      %p65 = scmp.ne.s32.totalorder %s48, %s64
      %p66 = scmp.eq.s32.totalorder %s17, 0
      %p67 = por %p65, %p66
      %s68 = ssub.s32 %s19, %s33
      %s69 = ssub.s32 %s20, %s29
      %s70 = sor.u32 %s68, %s69
      %p71 = scmp.eq.s32.totalorder %s70, 0
      %s73 = sadd.s32 %s72, 1
      %s74 = scalar_select %p71, %s72, %s73
      %p77 = pneg %p71
      %p78 = scmp.eq.s32.totalorder %s11, 1
      %p79 = por %p77, %p78
      %p80 = scmp.ne.s32.totalorder %s72, %s75
      %p81 = scmp.eq.s32.totalorder %s11, 0
      %p82 = por %p80, %p81
      %p83 = scmp.ne.s32.totalorder %s72, %s75
      %p84 = scmp.eq.s32.totalorder %s16, 1
      %p85 = por %p83, %p84
      %p86 = scmp.ne.s32.totalorder %s75, %s76
      %p87 = scmp.eq.s32.totalorder %s16, 0
      %p88 = por %p86, %p87
      %p89 = scmp.ne.s32.totalorder %s75, %s76
      %p90 = scmp.eq.s32.totalorder %s17, 1
      %p91 = por %p89, %p90
      %p93 = scmp.ne.s32.totalorder %s76, %s92
      %p94 = scmp.eq.s32.totalorder %s17, 0
      %p95 = por %p93, %p94
      %s96 = sadd.s32 %s18, %s19
      %s97 = sadd.s32 %s37, %s33
      %s98 = ssub.s32 %s96, %s97
      %s99 = ssub.s32 %s20, %s29
      %s100 = sor.u32 %s98, %s99
      %p101 = scmp.eq.s32.totalorder %s100, 0
      %s103 = sadd.s32 %s102, 1
      %s104 = scalar_select %p101, %s102, %s103
      %p107 = pneg %p101
      %p108 = scmp.eq.s32.totalorder %s11, 1
      %p109 = por %p107, %p108
      %p110 = scmp.ne.s32.totalorder %s102, %s105
      %p111 = scmp.eq.s32.totalorder %s11, 0
      %p112 = por %p110, %p111
      %p113 = scmp.ne.s32.totalorder %s102, %s105
      %p114 = scmp.eq.s32.totalorder %s16, 1
      %p115 = por %p113, %p114
      %p116 = scmp.ne.s32.totalorder %s105, %s106
      %p117 = scmp.eq.s32.totalorder %s16, 0
      %p118 = por %p116, %p117
      %p119 = scmp.ne.s32.totalorder %s105, %s106
      %p120 = scmp.eq.s32.totalorder %s17, 1
      %p121 = por %p119, %p120
      %p123 = scmp.ne.s32.totalorder %s106, %s122
      %p124 = scmp.eq.s32.totalorder %s17, 0
      %p125 = por %p123, %p124
      %p126 = scmp.le.s32.totalorder 1, %s11
      %p127 = scmp.lt.s32.totalorder %s11, 3
      %p128 = pnand %p126, %p127
      %p129 = pneg %p128
      // Predicated region
      $region9: #{tpu_custom_call.1} parent=5 // pred_check
        _
      $region10: #{tpu_custom_call.1} parent=5 // pred_check_branch
        %131 = sbr.rel (%p128) target = $region12
      $region11: #{tpu_custom_call.1} parent=5 // pred_region
        %s132 = ssub.s32 %s11, 1
        // Predicated region
        $region13: #{tpu_custom_call.1} parent=11 // pred_check
          %p133 = pneg %p88
        $region14: #{tpu_custom_call.1} parent=11 // pred_check_branch
          %135 = sbr.rel (%p133) target = $region16
        $region15: #{tpu_custom_call.1} parent=11 // pred_region
          %s136 = smul.u32 2, %s22
          %p137 = scmp.lt.s32.totalorder %s136, 1
          %s138 = scalar_select %p137, %s136, 1
          %p139 = scmp.lt.s32.totalorder %s23, 0
          %s140 = scalar_select %p139, %s23, 0
          %s141 = sadd.s32 %s140, %s138
          %s142 = scalar_lea.vmem %s1, %s141
          %s143 = smul.u32 2, %s22
        $region16: #{tpu_custom_call.1} parent=11 // pred_fallthru
          _
      $region12: #{tpu_custom_call.1} parent=5 // pred_fallthru
        _
      %p144 = scmp.lt.s32.totalorder %s11, 2
      // Predicated region
      $region17: #{tpu_custom_call.1} parent=5 // pred_check
        %p145 = pneg %p144
      $region18: #{tpu_custom_call.1} parent=5 // pred_check_branch
        %147 = sbr.rel (%p145) target = $region20
      $region19: #{tpu_custom_call.1} parent=5 // pred_region
        // Predicated region
        $region21: #{tpu_custom_call.1} parent=19 // pred_check
          %p148 = pneg %p54
        $region22: #{tpu_custom_call.1} parent=19 // pred_check_branch
          %150 = sbr.rel (%p148) target = $region24
        $region23: #{tpu_custom_call.1} parent=19 // pred_region
          %s151 = sadd.s32 %s18, %s19
          %s152 = smul.u32 2, %s151
          %p153 = scmp.lt.s32.totalorder %s152, 3
          %s154 = scalar_select %p153, %s152, 3
          %p155 = scmp.lt.s32.totalorder %s20, 0
          %s156 = scalar_select %p155, %s20, 0
          %s157 = smul.addr %s154, 32
          %s158 = sadd.s32 %s156, %s157
          %s159 = smul.addr %s158, 8
          %s160 = scalar_lea.vmem %s0, %s159
          %s161 = sadd.s32 %s18, %s19
          %s162 = smul.u32 2, %s161
        $region24: #{tpu_custom_call.1} parent=19 // pred_fallthru
          _
      $region20: #{tpu_custom_call.1} parent=5 // pred_fallthru
        _
      %p163 = scmp.le.s32.totalorder 1, %s11
      %p164 = scmp.lt.s32.totalorder %s11, 3
      %p165 = pnand %p163, %p164
      %p166 = pneg %p165
      // Predicated region
      $region25: #{tpu_custom_call.1} parent=5 // pred_check
        _
      $region26: #{tpu_custom_call.1} parent=5 // pred_check_branch
        %168 = sbr.rel (%p165) target = $region28
      $region27: #{tpu_custom_call.1} parent=5 // pred_region
        %s169 = ssub.s32 %s11, 1
        %s170 = sadd.s32 %s21, %s22
        %s171 = smul.u32 2, %s170
        %p172 = scmp.lt.s32.totalorder %s171, 3
        %s173 = scalar_select %p172, %s171, 3
        %p174 = scmp.lt.s32.totalorder %s23, 0
        %s175 = scalar_select %p174, %s23, 0
        %s176 = smul.addr %s173, 32
        %s177 = sadd.s32 %s175, %s176
        %s178 = smul.addr %s177, 8
        %s179 = scalar_lea.vmem %s0, %s178
        %p180 = pneg %p60
        %p181 = pneg %p57
        %s182 = smul.u32 2, %s22
        %p183 = scmp.lt.s32.totalorder %s182, 1
        %s184 = scalar_select %p183, %s182, 1
        %p185 = scmp.lt.s32.totalorder %s23, 0
        %s186 = scalar_select %p185, %s23, 0
        %s187 = sadd.s32 %s186, %s184
        %s188 = scalar_lea.vmem %s1, %s187
        %p189 = pneg %p88
        %p190 = pneg %p85
        %p191 = pneg %p118
        %p192 = pneg %p115
        %s193 = sand.u32 %s105, 1
        %s194 = scalar_lea.sflag [#allocation3], %s193
        %s195 = sand.u32 %s105, 1
        %s196 = scalar_lea.vmem [#allocation2], %s195
        %s197 = sadd.s32 %s21, %s22
        %s198 = smul.u32 2, %s197
        %p199 = scmp.lt.s32.totalorder %s198, 3
        %s200 = scalar_select %p199, %s198, 3
        %p201 = scmp.lt.s32.totalorder %s23, 0
        %s202 = scalar_select %p201, %s23, 0
        %s203 = smul.addr %s200, 32
        %s204 = sadd.s32 %s202, %s203
        %s205 = smul.addr %s204, 8
        %s206 = scalar_lea.vmem %s0, %s205
        %s207 = sadd.s32 %s21, %s22
        %s208 = smul.u32 2, %s207
        %s209 = smul.u32 2, %s22
        %p210 = scmp.lt.s32.totalorder %s209, 1
        %s211 = scalar_select %p210, %s209, 1
        %p212 = scmp.lt.s32.totalorder %s23, 0
        %s213 = scalar_select %p212, %s23, 0
        %s214 = sadd.s32 %s213, %s211
        %s215 = scalar_lea.vmem %s1, %s214
        %s216 = smul.u32 2, %s22
        %s217 = sadd.s32 %s21, %s22
        %v218 = vld [vmem:[%s206] sm:$0xff]
        %v219 = vld [vmem:[%s206 + $0x8] sm:$0xff]
        %v220 = vld [vmem:[%s206 + $0x10] sm:$0xff]
        %v221 = vld [vmem:[%s206 + $0x18] sm:$0xff]
        %v222 = vld [vmem:[%s206 + $0x20] sm:$0xff]
        %v223 = vld [vmem:[%s206 + $0x28] sm:$0xff]
        %v224 = vld [vmem:[%s206 + $0x30] sm:$0xff]
        %v225 = vld [vmem:[%s206 + $0x38] sm:$0xff]
        %v226 = vld [vmem:[%s206 + $0x40] sm:$0xff]
        %v227 = vld [vmem:[%s206 + $0x48] sm:$0xff]
        %v228 = vld [vmem:[%s206 + $0x50] sm:$0xff]
        %v229 = vld [vmem:[%s206 + $0x58] sm:$0xff]
        %v230 = vld [vmem:[%s206 + $0x60] sm:$0xff]
        %v231 = vld [vmem:[%s206 + $0x68] sm:$0xff]
        %v232 = vld [vmem:[%s206 + $0x70] sm:$0xff]
        %v233 = vld [vmem:[%s206 + $0x78] sm:$0xff]
        %v234 = vld [vmem:[%s206 + $0x80] sm:$0xff]
        %v235 = vld [vmem:[%s206 + $0x88] sm:$0xff]
        %v236 = vld [vmem:[%s206 + $0x90] sm:$0xff]
        %v237 = vld [vmem:[%s206 + $0x98] sm:$0xff]
        %v238 = vld [vmem:[%s206 + $0xa0] sm:$0xff]
        %v239 = vld [vmem:[%s206 + $0xa8] sm:$0xff]
        %v240 = vld [vmem:[%s206 + $0xb0] sm:$0xff]
        %v241 = vld [vmem:[%s206 + $0xb8] sm:$0xff]
        %v242 = vld [vmem:[%s206 + $0xc0] sm:$0xff]
        %v243 = vld [vmem:[%s206 + $0xc8] sm:$0xff]
        %v244 = vld [vmem:[%s206 + $0xd0] sm:$0xff]
        %v245 = vld [vmem:[%s206 + $0xd8] sm:$0xff]
        %v246 = vld [vmem:[%s206 + $0xe0] sm:$0xff]
        %v247 = vld [vmem:[%s206 + $0xe8] sm:$0xff]
        %v248 = vld [vmem:[%s206 + $0xf0] sm:$0xff]
        %v249 = vld [vmem:[%s206 + $0xf8] sm:$0xff]
        %v250 = vld [vmem:[%s206 + $0x100] sm:$0xff]
        %v251 = vld [vmem:[%s206 + $0x108] sm:$0xff]
        %v252 = vld [vmem:[%s206 + $0x110] sm:$0xff]
        %v253 = vld [vmem:[%s206 + $0x118] sm:$0xff]
        %v254 = vld [vmem:[%s206 + $0x120] sm:$0xff]
        %v255 = vld [vmem:[%s206 + $0x128] sm:$0xff]
        %v256 = vld [vmem:[%s206 + $0x130] sm:$0xff]
        %v257 = vld [vmem:[%s206 + $0x138] sm:$0xff]
        %v258 = vld [vmem:[%s206 + $0x140] sm:$0xff]
        %v259 = vld [vmem:[%s206 + $0x148] sm:$0xff]
        %v260 = vld [vmem:[%s206 + $0x150] sm:$0xff]
        %v261 = vld [vmem:[%s206 + $0x158] sm:$0xff]
        %v262 = vld [vmem:[%s206 + $0x160] sm:$0xff]
        %v263 = vld [vmem:[%s206 + $0x168] sm:$0xff]
        %v264 = vld [vmem:[%s206 + $0x170] sm:$0xff]
        %v265 = vld [vmem:[%s206 + $0x178] sm:$0xff]
        %v266 = vld [vmem:[%s206 + $0x180] sm:$0xff]
        %v267 = vld [vmem:[%s206 + $0x188] sm:$0xff]
        %v268 = vld [vmem:[%s206 + $0x190] sm:$0xff]
        %v269 = vld [vmem:[%s206 + $0x198] sm:$0xff]
        %v270 = vld [vmem:[%s206 + $0x1a0] sm:$0xff]
        %v271 = vld [vmem:[%s206 + $0x1a8] sm:$0xff]
        %v272 = vld [vmem:[%s206 + $0x1b0] sm:$0xff]
        %v273 = vld [vmem:[%s206 + $0x1b8] sm:$0xff]
        %v274 = vld [vmem:[%s206 + $0x1c0] sm:$0xff]
        %v275 = vld [vmem:[%s206 + $0x1c8] sm:$0xff]
        %v276 = vld [vmem:[%s206 + $0x1d0] sm:$0xff]
        %v277 = vld [vmem:[%s206 + $0x1d8] sm:$0xff]
        %v278 = vld [vmem:[%s206 + $0x1e0] sm:$0xff]
        %v279 = vld [vmem:[%s206 + $0x1e8] sm:$0xff]
        %v280 = vld [vmem:[%s206 + $0x1f0] sm:$0xff]
        %v281 = vld [vmem:[%s206 + $0x1f8] sm:$0xff]
        %v282 = vld [vmem:[%s215] sm:$0x1]
        %v283 = vld [vmem:[%s215 + $0x1] sm:$0x1]
        %vm284 = vcmask 130048
        %v285 = vsel %vm284, %v218, -inf
        %v286 = vsel %vm284, %v219, -inf
        %v287 = vsel %vm284, %v220, -inf
        %v288 = vmax.f32 %v285, %v287
        %v289 = vsel %vm284, %v221, -inf
        %v290 = vmax.f32 %v286, %v289
        %v291 = vsel %vm284, %v222, -inf
        %v292 = vmax.f32 %v288, %v291
        %v293 = vsel %vm284, %v223, -inf
        %v294 = vmax.f32 %v290, %v293
        %v295 = vsel %vm284, %v224, -inf
        %v296 = vmax.f32 %v292, %v295
        %v297 = vsel %vm284, %v225, -inf
        %v298 = vmax.f32 %v294, %v297
        %v299 = vsel %vm284, %v226, -inf
        %v300 = vmax.f32 %v296, %v299
        %v301 = vsel %vm284, %v227, -inf
        %v302 = vmax.f32 %v298, %v301
        %v303 = vsel %vm284, %v228, -inf
        %v304 = vmax.f32 %v300, %v303
        %v305 = vsel %vm284, %v229, -inf
        %v306 = vmax.f32 %v302, %v305
        %v307 = vsel %vm284, %v230, -inf
        %v308 = vmax.f32 %v304, %v307
        %v309 = vsel %vm284, %v231, -inf
        %v310 = vmax.f32 %v306, %v309
        %v311 = vsel %vm284, %v232, -inf
        %v312 = vmax.f32 %v308, %v311
        %v313 = vsel %vm284, %v233, -inf
        %v314 = vmax.f32 %v310, %v313
        %v315 = vsel %vm284, %v234, -inf
        %v316 = vmax.f32 %v312, %v315
        %v317 = vsel %vm284, %v235, -inf
        %v318 = vmax.f32 %v314, %v317
        %v319 = vsel %vm284, %v236, -inf
        %v320 = vmax.f32 %v316, %v319
        %v321 = vsel %vm284, %v237, -inf
        %v322 = vmax.f32 %v318, %v321
        %v323 = vsel %vm284, %v238, -inf
        %v324 = vmax.f32 %v320, %v323
        %v325 = vsel %vm284, %v239, -inf
        %v326 = vmax.f32 %v322, %v325
        %v327 = vsel %vm284, %v240, -inf
        %v328 = vmax.f32 %v324, %v327
        %v329 = vsel %vm284, %v241, -inf
        %v330 = vmax.f32 %v326, %v329
        %v331 = vsel %vm284, %v242, -inf
        %v332 = vmax.f32 %v328, %v331
        %v333 = vsel %vm284, %v243, -inf
        %v334 = vmax.f32 %v330, %v333
        %v335 = vsel %vm284, %v244, -inf
        %v336 = vmax.f32 %v332, %v335
        %v337 = vsel %vm284, %v245, -inf
        %v338 = vmax.f32 %v334, %v337
        %v339 = vsel %vm284, %v246, -inf
        %v340 = vmax.f32 %v336, %v339
        %v341 = vsel %vm284, %v247, -inf
        %v342 = vmax.f32 %v338, %v341
        %v343 = vsel %vm284, %v248, -inf
        %v344 = vmax.f32 %v340, %v343
        %v345 = vsel %vm284, %v249, -inf
        %v346 = vmax.f32 %v342, %v345
        %v347 = vmax.f32 %v344, %v346
        %v348 = vrot.slane %v347, 4
        %v349 = vmax.f32 %v347, %v348
        %v350 = vrot.slane %v349, 2
        %v351 = vmax.f32 %v349, %v350
        %v352 = vrot.slane %v351, 1
        %v353 = vmax.f32 %v351, %v352
        %v354 = vsel %vm284, %v250, -inf
        %v355 = vsel %vm284, %v251, -inf
        %v356 = vsel %vm284, %v252, -inf
        %v357 = vmax.f32 %v354, %v356
        %v358 = vsel %vm284, %v253, -inf
        %v359 = vmax.f32 %v355, %v358
        %v360 = vsel %vm284, %v254, -inf
        %v361 = vmax.f32 %v357, %v360
        %v362 = vsel %vm284, %v255, -inf
        %v363 = vmax.f32 %v359, %v362
        %v364 = vsel %vm284, %v256, -inf
        %v365 = vmax.f32 %v361, %v364
        %v366 = vsel %vm284, %v257, -inf
        %v367 = vmax.f32 %v363, %v366
        %v368 = vsel %vm284, %v258, -inf
        %v369 = vmax.f32 %v365, %v368
        %v370 = vsel %vm284, %v259, -inf
        %v371 = vmax.f32 %v367, %v370
        %v372 = vsel %vm284, %v260, -inf
        %v373 = vmax.f32 %v369, %v372
        %v374 = vsel %vm284, %v261, -inf
        %v375 = vmax.f32 %v371, %v374
        %v376 = vsel %vm284, %v262, -inf
        %v377 = vmax.f32 %v373, %v376
        %v378 = vsel %vm284, %v263, -inf
        %v379 = vmax.f32 %v375, %v378
        %v380 = vsel %vm284, %v264, -inf
        %v381 = vmax.f32 %v377, %v380
        %v382 = vsel %vm284, %v265, -inf
        %v383 = vmax.f32 %v379, %v382
        %v384 = vsel %vm284, %v266, -inf
        %v385 = vmax.f32 %v381, %v384
        %v386 = vsel %vm284, %v267, -inf
        %v387 = vmax.f32 %v383, %v386
        %v388 = vsel %vm284, %v268, -inf
        %v389 = vmax.f32 %v385, %v388
        %v390 = vsel %vm284, %v269, -inf
        %v391 = vmax.f32 %v387, %v390
        %v392 = vsel %vm284, %v270, -inf
        %v393 = vmax.f32 %v389, %v392
        %v394 = vsel %vm284, %v271, -inf
        %v395 = vmax.f32 %v391, %v394
        %v396 = vsel %vm284, %v272, -inf
        %v397 = vmax.f32 %v393, %v396
        %v398 = vsel %vm284, %v273, -inf
        %v399 = vmax.f32 %v395, %v398
        %v400 = vsel %vm284, %v274, -inf
        %v401 = vmax.f32 %v397, %v400
        %v402 = vsel %vm284, %v275, -inf
        %v403 = vmax.f32 %v399, %v402
        %v404 = vsel %vm284, %v276, -inf
        %v405 = vmax.f32 %v401, %v404
        %v406 = vsel %vm284, %v277, -inf
        %v407 = vmax.f32 %v403, %v406
        %v408 = vsel %vm284, %v278, -inf
        %v409 = vmax.f32 %v405, %v408
        %v410 = vsel %vm284, %v279, -inf
        %v411 = vmax.f32 %v407, %v410
        %v412 = vsel %vm284, %v280, -inf
        %v413 = vmax.f32 %v409, %v412
        %v414 = vsel %vm284, %v281, -inf
        %v415 = vmax.f32 %v411, %v414
        %v416 = vmax.f32 %v413, %v415
        %v417 = vrot.slane %v416, 4
        %v418 = vmax.f32 %v416, %v417
        %v419 = vrot.slane %v418, 2
        %v420 = vmax.f32 %v418, %v419
        %v421 = vrot.slane %v420, 1
        %v422 = vmax.f32 %v420, %v421
        %v423 = vsub.f32 %v218, %v353
        %v424 = vsub.f32 %v219, %v353
        %v425 = vsub.f32 %v220, %v353
        %v426 = vsub.f32 %v221, %v353
        %v427 = vsub.f32 %v222, %v353
        %v428 = vsub.f32 %v223, %v353
        %v429 = vsub.f32 %v224, %v353
        %v430 = vsub.f32 %v225, %v353
        %v431 = vsub.f32 %v226, %v353
        %v432 = vsub.f32 %v227, %v353
        %v433 = vsub.f32 %v228, %v353
        %v434 = vsub.f32 %v229, %v353
        %v435 = vsub.f32 %v230, %v353
        %v436 = vsub.f32 %v231, %v353
        %v437 = vsub.f32 %v232, %v353
        %v438 = vsub.f32 %v233, %v353
        %v439 = vsub.f32 %v234, %v353
        %v440 = vsub.f32 %v235, %v353
        %v441 = vsub.f32 %v236, %v353
        %v442 = vsub.f32 %v237, %v353
        %v443 = vsub.f32 %v238, %v353
        %v444 = vsub.f32 %v239, %v353
        %v445 = vsub.f32 %v240, %v353
        %v446 = vsub.f32 %v241, %v353
        %v447 = vsub.f32 %v242, %v353
        %v448 = vsub.f32 %v243, %v353
        %v449 = vsub.f32 %v244, %v353
        %v450 = vsub.f32 %v245, %v353
        %v451 = vsub.f32 %v246, %v353
        %v452 = vsub.f32 %v247, %v353
        %v453 = vsub.f32 %v248, %v353
        %v454 = vsub.f32 %v249, %v353
        %v455 = vsub.f32 %v250, %v422
        %v456 = vsub.f32 %v251, %v422
        %v457 = vsub.f32 %v252, %v422
        %v458 = vsub.f32 %v253, %v422
        %v459 = vsub.f32 %v254, %v422
        %v460 = vsub.f32 %v255, %v422
        %v461 = vsub.f32 %v256, %v422
        %v462 = vsub.f32 %v257, %v422
        %v463 = vsub.f32 %v258, %v422
        %v464 = vsub.f32 %v259, %v422
        %v465 = vsub.f32 %v260, %v422
        %v466 = vsub.f32 %v261, %v422
        %v467 = vsub.f32 %v262, %v422
        %v468 = vsub.f32 %v263, %v422
        %v469 = vsub.f32 %v264, %v422
        %v470 = vsub.f32 %v265, %v422
        %v471 = vsub.f32 %v266, %v422
        %v472 = vsub.f32 %v267, %v422
        %v473 = vsub.f32 %v268, %v422
        %v474 = vsub.f32 %v269, %v422
        %v475 = vsub.f32 %v270, %v422
        %v476 = vsub.f32 %v271, %v422
        %v477 = vsub.f32 %v272, %v422
        %v478 = vsub.f32 %v273, %v422
        %v479 = vsub.f32 %v274, %v422
        %v480 = vsub.f32 %v275, %v422
        %v481 = vsub.f32 %v276, %v422
        %v482 = vsub.f32 %v277, %v422
        %v483 = vsub.f32 %v278, %v422
        %v484 = vsub.f32 %v279, %v422
        %v485 = vsub.f32 %v280, %v422
        %v486 = vsub.f32 %v281, %v422
        %v487 = vmul.f32 %v423, 1.442695
        %v488 = vpow.pop %v487
        %v489 = vmul.f32 %v424, 1.442695
        %v490 = vpow.pop %v489
        %v491 = vmul.f32 %v425, 1.442695
        %v492 = vpow.pop %v491
        %v493 = vmul.f32 %v426, 1.442695
        %v494 = vpow.pop %v493
        %v495 = vmul.f32 %v427, 1.442695
        %v496 = vpow.pop %v495
        %v497 = vmul.f32 %v428, 1.442695
        %v498 = vpow.pop %v497
        %v499 = vmul.f32 %v429, 1.442695
        %v500 = vpow.pop %v499
        %v501 = vmul.f32 %v430, 1.442695
        %v502 = vpow.pop %v501
        %v503 = vmul.f32 %v431, 1.442695
        %v504 = vpow.pop %v503
        %v505 = vmul.f32 %v432, 1.442695
        %v506 = vpow.pop %v505
        %v507 = vmul.f32 %v433, 1.442695
        %v508 = vpow.pop %v507
        %v509 = vmul.f32 %v434, 1.442695
        %v510 = vpow.pop %v509
        %v511 = vmul.f32 %v435, 1.442695
        %v512 = vpow.pop %v511
        %v513 = vmul.f32 %v436, 1.442695
        %v514 = vpow.pop %v513
        %v515 = vmul.f32 %v437, 1.442695
        %v516 = vpow.pop %v515
        %v517 = vmul.f32 %v438, 1.442695
        %v518 = vpow.pop %v517
        %v519 = vmul.f32 %v439, 1.442695
        %v520 = vpow.pop %v519
        %v521 = vmul.f32 %v440, 1.442695
        %v522 = vpow.pop %v521
        %v523 = vmul.f32 %v441, 1.442695
        %v524 = vpow.pop %v523
        %v525 = vmul.f32 %v442, 1.442695
        %v526 = vpow.pop %v525
        %v527 = vmul.f32 %v443, 1.442695
        %v528 = vpow.pop %v527
        %v529 = vmul.f32 %v444, 1.442695
        %v530 = vpow.pop %v529
        %v531 = vmul.f32 %v445, 1.442695
        %v532 = vpow.pop %v531
        %v533 = vmul.f32 %v446, 1.442695
        %v534 = vpow.pop %v533
        %v535 = vmul.f32 %v447, 1.442695
        %v536 = vpow.pop %v535
        %v537 = vmul.f32 %v448, 1.442695
        %v538 = vpow.pop %v537
        %v539 = vmul.f32 %v449, 1.442695
        %v540 = vpow.pop %v539
        %v541 = vmul.f32 %v450, 1.442695
        %v542 = vpow.pop %v541
        %v543 = vmul.f32 %v451, 1.442695
        %v544 = vpow.pop %v543
        %v545 = vmul.f32 %v452, 1.442695
        %v546 = vpow.pop %v545
        %v547 = vmul.f32 %v453, 1.442695
        %v548 = vpow.pop %v547
        %v549 = vmul.f32 %v454, 1.442695
        %v550 = vpow.pop %v549
        %v551 = vmul.f32 %v455, 1.442695
        %v552 = vpow.pop %v551
        %v553 = vmul.f32 %v456, 1.442695
        %v554 = vpow.pop %v553
        %v555 = vmul.f32 %v457, 1.442695
        %v556 = vpow.pop %v555
        %v557 = vmul.f32 %v458, 1.442695
        %v558 = vpow.pop %v557
        %v559 = vmul.f32 %v459, 1.442695
        %v560 = vpow.pop %v559
        %v561 = vmul.f32 %v460, 1.442695
        %v562 = vpow.pop %v561
        %v563 = vmul.f32 %v461, 1.442695
        %v564 = vpow.pop %v563
        %v565 = vmul.f32 %v462, 1.442695
        %v566 = vpow.pop %v565
        %v567 = vmul.f32 %v463, 1.442695
        %v568 = vpow.pop %v567
        %v569 = vmul.f32 %v464, 1.442695
        %v570 = vpow.pop %v569
        %v571 = vmul.f32 %v465, 1.442695
        %v572 = vpow.pop %v571
        %v573 = vmul.f32 %v466, 1.442695
        %v574 = vpow.pop %v573
        %v575 = vmul.f32 %v467, 1.442695
        %v576 = vpow.pop %v575
        %v577 = vmul.f32 %v468, 1.442695
        %v578 = vpow.pop %v577
        %v579 = vmul.f32 %v469, 1.442695
        %v580 = vpow.pop %v579
        %v581 = vmul.f32 %v470, 1.442695
        %v582 = vpow.pop %v581
        %v583 = vmul.f32 %v471, 1.442695
        %v584 = vpow.pop %v583
        %v585 = vmul.f32 %v472, 1.442695
        %v586 = vpow.pop %v585
        %v587 = vmul.f32 %v473, 1.442695
        %v588 = vpow.pop %v587
        %v589 = vmul.f32 %v474, 1.442695
        %v590 = vpow.pop %v589
        %v591 = vmul.f32 %v475, 1.442695
        %v592 = vpow.pop %v591
        %v593 = vmul.f32 %v476, 1.442695
        %v594 = vpow.pop %v593
        %v595 = vmul.f32 %v477, 1.442695
        %v596 = vpow.pop %v595
        %v597 = vmul.f32 %v478, 1.442695
        %v598 = vpow.pop %v597
        %v599 = vmul.f32 %v479, 1.442695
        %v600 = vpow.pop %v599
        %v601 = vmul.f32 %v480, 1.442695
        %v602 = vpow.pop %v601
        %v603 = vmul.f32 %v481, 1.442695
        %v604 = vpow.pop %v603
        %v605 = vmul.f32 %v482, 1.442695
        %v606 = vpow.pop %v605
        %v607 = vmul.f32 %v483, 1.442695
        %v608 = vpow.pop %v607
        %v609 = vmul.f32 %v484, 1.442695
        %v610 = vpow.pop %v609
        %v611 = vmul.f32 %v485, 1.442695
        %v612 = vpow.pop %v611
        %v613 = vmul.f32 %v486, 1.442695
        %v614 = vpow.pop %v613
        %v615 = vsel %vm284, %v488, 0.0
        %v616 = vsel %vm284, %v490, 0.0
        %v617 = vadd.f32 %v615, %v616
        %v618 = vsel %vm284, %v492, 0.0
        %v619 = vadd.f32 %v617, %v618
        %v620 = vsel %vm284, %v494, 0.0
        %v621 = vadd.f32 %v619, %v620
        %v622 = vsel %vm284, %v496, 0.0
        %v623 = vadd.f32 %v621, %v622
        %v624 = vsel %vm284, %v498, 0.0
        %v625 = vadd.f32 %v623, %v624
        %v626 = vsel %vm284, %v500, 0.0
        %v627 = vadd.f32 %v625, %v626
        %v628 = vsel %vm284, %v502, 0.0
        %v629 = vadd.f32 %v627, %v628
        %v630 = vsel %vm284, %v504, 0.0
        %v631 = vadd.f32 %v629, %v630
        %v632 = vsel %vm284, %v506, 0.0
        %v633 = vadd.f32 %v631, %v632
        %v634 = vsel %vm284, %v508, 0.0
        %v635 = vadd.f32 %v633, %v634
        %v636 = vsel %vm284, %v510, 0.0
        %v637 = vadd.f32 %v635, %v636
        %v638 = vsel %vm284, %v512, 0.0
        %v639 = vadd.f32 %v637, %v638
        %v640 = vsel %vm284, %v514, 0.0
        %v641 = vadd.f32 %v639, %v640
        %v642 = vsel %vm284, %v516, 0.0
        %v643 = vadd.f32 %v641, %v642
        %v644 = vsel %vm284, %v518, 0.0
        %v645 = vadd.f32 %v643, %v644
        %v646 = vsel %vm284, %v520, 0.0
        %v647 = vadd.f32 %v645, %v646
        %v648 = vsel %vm284, %v522, 0.0
        %v649 = vadd.f32 %v647, %v648
        %v650 = vsel %vm284, %v524, 0.0
        %v651 = vadd.f32 %v649, %v650
        %v652 = vsel %vm284, %v526, 0.0
        %v653 = vadd.f32 %v651, %v652
        %v654 = vsel %vm284, %v528, 0.0
        %v655 = vadd.f32 %v653, %v654
        %v656 = vsel %vm284, %v530, 0.0
        %v657 = vadd.f32 %v655, %v656
        %v658 = vsel %vm284, %v532, 0.0
        %v659 = vadd.f32 %v657, %v658
        %v660 = vsel %vm284, %v534, 0.0
        %v661 = vadd.f32 %v659, %v660
        %v662 = vsel %vm284, %v536, 0.0
        %v663 = vadd.f32 %v661, %v662
        %v664 = vsel %vm284, %v538, 0.0
        %v665 = vadd.f32 %v663, %v664
        %v666 = vsel %vm284, %v540, 0.0
        %v667 = vadd.f32 %v665, %v666
        %v668 = vsel %vm284, %v542, 0.0
        %v669 = vadd.f32 %v667, %v668
        %v670 = vsel %vm284, %v544, 0.0
        %v671 = vadd.f32 %v669, %v670
        %v672 = vsel %vm284, %v546, 0.0
        %v673 = vadd.f32 %v671, %v672
        %v674 = vsel %vm284, %v548, 0.0
        %v675 = vadd.f32 %v673, %v674
        %v676 = vsel %vm284, %v550, 0.0
        %v677 = vadd.f32 %v675, %v676
        %v678 = vrot.slane %v677, 4
        %v679 = vadd.f32 %v677, %v678
        %v680 = vrot.slane %v679, 2
        %v681 = vadd.f32 %v679, %v680
        %v682 = vrot.slane %v681, 1
        %v683 = vadd.f32 %v681, %v682
        %v684 = vsel %vm284, %v552, 0.0
        %v685 = vsel %vm284, %v554, 0.0
        %v686 = vadd.f32 %v684, %v685
        %v687 = vsel %vm284, %v556, 0.0
        %v688 = vadd.f32 %v686, %v687
        %v689 = vsel %vm284, %v558, 0.0
        %v690 = vadd.f32 %v688, %v689
        %v691 = vsel %vm284, %v560, 0.0
        %v692 = vadd.f32 %v690, %v691
        %v693 = vsel %vm284, %v562, 0.0
        %v694 = vadd.f32 %v692, %v693
        %v695 = vsel %vm284, %v564, 0.0
        %v696 = vadd.f32 %v694, %v695
        %v697 = vsel %vm284, %v566, 0.0
        %v698 = vadd.f32 %v696, %v697
        %v699 = vsel %vm284, %v568, 0.0
        %v700 = vadd.f32 %v698, %v699
        %v701 = vsel %vm284, %v570, 0.0
        %v702 = vadd.f32 %v700, %v701
        %v703 = vsel %vm284, %v572, 0.0
        %v704 = vadd.f32 %v702, %v703
        %v705 = vsel %vm284, %v574, 0.0
        %v706 = vadd.f32 %v704, %v705
        %v707 = vsel %vm284, %v576, 0.0
        %v708 = vadd.f32 %v706, %v707
        %v709 = vsel %vm284, %v578, 0.0
        %v710 = vadd.f32 %v708, %v709
        %v711 = vsel %vm284, %v580, 0.0
        %v712 = vadd.f32 %v710, %v711
        %v713 = vsel %vm284, %v582, 0.0
        %v714 = vadd.f32 %v712, %v713
        %v715 = vsel %vm284, %v584, 0.0
        %v716 = vadd.f32 %v714, %v715
        %v717 = vsel %vm284, %v586, 0.0
        %v718 = vadd.f32 %v716, %v717
        %v719 = vsel %vm284, %v588, 0.0
        %v720 = vadd.f32 %v718, %v719
        %v721 = vsel %vm284, %v590, 0.0
        %v722 = vadd.f32 %v720, %v721
        %v723 = vsel %vm284, %v592, 0.0
        %v724 = vadd.f32 %v722, %v723
        %v725 = vsel %vm284, %v594, 0.0
        %v726 = vadd.f32 %v724, %v725
        %v727 = vsel %vm284, %v596, 0.0
        %v728 = vadd.f32 %v726, %v727
        %v729 = vsel %vm284, %v598, 0.0
        %v730 = vadd.f32 %v728, %v729
        %v731 = vsel %vm284, %v600, 0.0
        %v732 = vadd.f32 %v730, %v731
        %v733 = vsel %vm284, %v602, 0.0
        %v734 = vadd.f32 %v732, %v733
        %v735 = vsel %vm284, %v604, 0.0
        %v736 = vadd.f32 %v734, %v735
        %v737 = vsel %vm284, %v606, 0.0
        %v738 = vadd.f32 %v736, %v737
        %v739 = vsel %vm284, %v608, 0.0
        %v740 = vadd.f32 %v738, %v739
        %v741 = vsel %vm284, %v610, 0.0
        %v742 = vadd.f32 %v740, %v741
        %v743 = vsel %vm284, %v612, 0.0
        %v744 = vadd.f32 %v742, %v743
        %v745 = vsel %vm284, %v614, 0.0
        %v746 = vadd.f32 %v744, %v745
        %v747 = vrot.slane %v746, 4
        %v748 = vadd.f32 %v746, %v747
        %v749 = vrot.slane %v748, 2
        %v750 = vadd.f32 %v748, %v749
        %v751 = vrot.slane %v750, 1
        %v752 = vadd.f32 %v750, %v751
        %v753 = vlog2.pop %v683
        %v754 = vmul.f32 %v753, 0.6931472
        %v755 = vlog2.pop %v752
        %v756 = vmul.f32 %v755, 0.6931472
        %v757 = vadd.f32 %v353, %v754
        %v758 = vadd.f32 %v422, %v756
        %v759 = vlaneseq
        %v760 = vshrl.u32 %v759, 7
        %v761 = vadd.s32 %v760, 8
        %v762 = vadd.s32 %v760, 16
        %v763 = vadd.s32 %v760, 24
        %v764 = vadd.s32 %v760, 32
        %v765 = vadd.s32 %v760, 40
        %v766 = vadd.s32 %v760, 48
        %v767 = vadd.s32 %v760, 56
        %v768 = vadd.s32 %v760, 64
        %v769 = vadd.s32 %v760, 72
        %v770 = vadd.s32 %v760, 80
        %v771 = vadd.s32 %v760, 88
        %v772 = vadd.s32 %v760, 96
        %v773 = vadd.s32 %v760, 104
        %v774 = vadd.s32 %v760, 112
        %v775 = vadd.s32 %v760, 120
        %v776 = vadd.s32 %v760, 128
        %v777 = vadd.s32 %v760, 136
        %v778 = vadd.s32 %v760, 144
        %v779 = vadd.s32 %v760, 152
        %v780 = vadd.s32 %v760, 160
        %v781 = vadd.s32 %v760, 168
        %v782 = vadd.s32 %v760, 176
        %v783 = vadd.s32 %v760, 184
        %v784 = vadd.s32 %v760, 192
        %v785 = vadd.s32 %v760, 200
        %v786 = vadd.s32 %v760, 208
        %v787 = vadd.s32 %v760, 216
        %v788 = vadd.s32 %v760, 224
        %v789 = vadd.s32 %v760, 232
        %v790 = vadd.s32 %v760, 240
        %v791 = vadd.s32 %v760, 248
        %v792 = vperm.slane %v282, 0
        %v793 = vperm.slane %v283, 0
        %vm794 = vcmp.eq.s32.totalorder %v760, %v792
        %vm795 = vcmp.eq.s32.totalorder %v761, %v792
        %vm796 = vcmp.eq.s32.totalorder %v762, %v792
        %vm797 = vcmp.eq.s32.totalorder %v763, %v792
        %vm798 = vcmp.eq.s32.totalorder %v764, %v792
        %vm799 = vcmp.eq.s32.totalorder %v765, %v792
        %vm800 = vcmp.eq.s32.totalorder %v766, %v792
        %vm801 = vcmp.eq.s32.totalorder %v767, %v792
        %vm802 = vcmp.eq.s32.totalorder %v768, %v792
        %vm803 = vcmp.eq.s32.totalorder %v769, %v792
        %vm804 = vcmp.eq.s32.totalorder %v770, %v792
        %vm805 = vcmp.eq.s32.totalorder %v771, %v792
        %vm806 = vcmp.eq.s32.totalorder %v772, %v792
        %vm807 = vcmp.eq.s32.totalorder %v773, %v792
        %vm808 = vcmp.eq.s32.totalorder %v774, %v792
        %vm809 = vcmp.eq.s32.totalorder %v775, %v792
        %vm810 = vcmp.eq.s32.totalorder %v776, %v792
        %vm811 = vcmp.eq.s32.totalorder %v777, %v792
        %vm812 = vcmp.eq.s32.totalorder %v778, %v792
        %vm813 = vcmp.eq.s32.totalorder %v779, %v792
        %vm814 = vcmp.eq.s32.totalorder %v780, %v792
        %vm815 = vcmp.eq.s32.totalorder %v781, %v792
        %vm816 = vcmp.eq.s32.totalorder %v782, %v792
        %vm817 = vcmp.eq.s32.totalorder %v783, %v792
        %vm818 = vcmp.eq.s32.totalorder %v784, %v792
        %vm819 = vcmp.eq.s32.totalorder %v785, %v792
        %vm820 = vcmp.eq.s32.totalorder %v786, %v792
        %vm821 = vcmp.eq.s32.totalorder %v787, %v792
        %vm822 = vcmp.eq.s32.totalorder %v788, %v792
        %vm823 = vcmp.eq.s32.totalorder %v789, %v792
        %vm824 = vcmp.eq.s32.totalorder %v790, %v792
        %vm825 = vcmp.eq.s32.totalorder %v791, %v792
        %vm826 = vcmp.eq.s32.totalorder %v760, %v793
        %vm827 = vcmp.eq.s32.totalorder %v761, %v793
        %vm828 = vcmp.eq.s32.totalorder %v762, %v793
        %vm829 = vcmp.eq.s32.totalorder %v763, %v793
        %vm830 = vcmp.eq.s32.totalorder %v764, %v793
        %vm831 = vcmp.eq.s32.totalorder %v765, %v793
        %vm832 = vcmp.eq.s32.totalorder %v766, %v793
        %vm833 = vcmp.eq.s32.totalorder %v767, %v793
        %vm834 = vcmp.eq.s32.totalorder %v768, %v793
        %vm835 = vcmp.eq.s32.totalorder %v769, %v793
        %vm836 = vcmp.eq.s32.totalorder %v770, %v793
        %vm837 = vcmp.eq.s32.totalorder %v771, %v793
        %vm838 = vcmp.eq.s32.totalorder %v772, %v793
        %vm839 = vcmp.eq.s32.totalorder %v773, %v793
        %vm840 = vcmp.eq.s32.totalorder %v774, %v793
        %vm841 = vcmp.eq.s32.totalorder %v775, %v793
        %vm842 = vcmp.eq.s32.totalorder %v776, %v793
        %vm843 = vcmp.eq.s32.totalorder %v777, %v793
        %vm844 = vcmp.eq.s32.totalorder %v778, %v793
        %vm845 = vcmp.eq.s32.totalorder %v779, %v793
        %vm846 = vcmp.eq.s32.totalorder %v780, %v793
        %vm847 = vcmp.eq.s32.totalorder %v781, %v793
        %vm848 = vcmp.eq.s32.totalorder %v782, %v793
        %vm849 = vcmp.eq.s32.totalorder %v783, %v793
        %vm850 = vcmp.eq.s32.totalorder %v784, %v793
        %vm851 = vcmp.eq.s32.totalorder %v785, %v793
        %vm852 = vcmp.eq.s32.totalorder %v786, %v793
        %vm853 = vcmp.eq.s32.totalorder %v787, %v793
        %vm854 = vcmp.eq.s32.totalorder %v788, %v793
        %vm855 = vcmp.eq.s32.totalorder %v789, %v793
        %vm856 = vcmp.eq.s32.totalorder %v790, %v793
        %vm857 = vcmp.eq.s32.totalorder %v791, %v793
        %v858 = vsel %vm794, %v218, 0.0
        %v859 = vsel %vm795, %v219, 0.0
        %v860 = vsel %vm796, %v220, 0.0
        %v861 = vsel %vm797, %v221, 0.0
        %v862 = vsel %vm798, %v222, 0.0
        %v863 = vsel %vm799, %v223, 0.0
        %v864 = vsel %vm800, %v224, 0.0
        %v865 = vsel %vm801, %v225, 0.0
        %v866 = vsel %vm802, %v226, 0.0
        %v867 = vsel %vm803, %v227, 0.0
        %v868 = vsel %vm804, %v228, 0.0
        %v869 = vsel %vm805, %v229, 0.0
        %v870 = vsel %vm806, %v230, 0.0
        %v871 = vsel %vm807, %v231, 0.0
        %v872 = vsel %vm808, %v232, 0.0
        %v873 = vsel %vm809, %v233, 0.0
        %v874 = vsel %vm810, %v234, 0.0
        %v875 = vsel %vm811, %v235, 0.0
        %v876 = vsel %vm812, %v236, 0.0
        %v877 = vsel %vm813, %v237, 0.0
        %v878 = vsel %vm814, %v238, 0.0
        %v879 = vsel %vm815, %v239, 0.0
        %v880 = vsel %vm816, %v240, 0.0
        %v881 = vsel %vm817, %v241, 0.0
        %v882 = vsel %vm818, %v242, 0.0
        %v883 = vsel %vm819, %v243, 0.0
        %v884 = vsel %vm820, %v244, 0.0
        %v885 = vsel %vm821, %v245, 0.0
        %v886 = vsel %vm822, %v246, 0.0
        %v887 = vsel %vm823, %v247, 0.0
        %v888 = vsel %vm824, %v248, 0.0
        %v889 = vsel %vm825, %v249, 0.0
        %v890 = vsel %vm826, %v250, 0.0
        %v891 = vsel %vm827, %v251, 0.0
        %v892 = vsel %vm828, %v252, 0.0
        %v893 = vsel %vm829, %v253, 0.0
        %v894 = vsel %vm830, %v254, 0.0
        %v895 = vsel %vm831, %v255, 0.0
        %v896 = vsel %vm832, %v256, 0.0
        %v897 = vsel %vm833, %v257, 0.0
        %v898 = vsel %vm834, %v258, 0.0
        %v899 = vsel %vm835, %v259, 0.0
        %v900 = vsel %vm836, %v260, 0.0
        %v901 = vsel %vm837, %v261, 0.0
        %v902 = vsel %vm838, %v262, 0.0
        %v903 = vsel %vm839, %v263, 0.0
        %v904 = vsel %vm840, %v264, 0.0
        %v905 = vsel %vm841, %v265, 0.0
        %v906 = vsel %vm842, %v266, 0.0
        %v907 = vsel %vm843, %v267, 0.0
        %v908 = vsel %vm844, %v268, 0.0
        %v909 = vsel %vm845, %v269, 0.0
        %v910 = vsel %vm846, %v270, 0.0
        %v911 = vsel %vm847, %v271, 0.0
        %v912 = vsel %vm848, %v272, 0.0
        %v913 = vsel %vm849, %v273, 0.0
        %v914 = vsel %vm850, %v274, 0.0
        %v915 = vsel %vm851, %v275, 0.0
        %v916 = vsel %vm852, %v276, 0.0
        %v917 = vsel %vm853, %v277, 0.0
        %v918 = vsel %vm854, %v278, 0.0
        %v919 = vsel %vm855, %v279, 0.0
        %v920 = vsel %vm856, %v280, 0.0
        %v921 = vsel %vm857, %v281, 0.0
        %v922 = vsel %vm284, %v858, 0.0
        %v923 = vsel %vm284, %v859, 0.0
        %v924 = vadd.f32 %v922, %v923
        %v925 = vsel %vm284, %v860, 0.0
        %v926 = vadd.f32 %v924, %v925
        %v927 = vsel %vm284, %v861, 0.0
        %v928 = vadd.f32 %v926, %v927
        %v929 = vsel %vm284, %v862, 0.0
        %v930 = vadd.f32 %v928, %v929
        %v931 = vsel %vm284, %v863, 0.0
        %v932 = vadd.f32 %v930, %v931
        %v933 = vsel %vm284, %v864, 0.0
        %v934 = vadd.f32 %v932, %v933
        %v935 = vsel %vm284, %v865, 0.0
        %v936 = vadd.f32 %v934, %v935
        %v937 = vsel %vm284, %v866, 0.0
        %v938 = vadd.f32 %v936, %v937
        %v939 = vsel %vm284, %v867, 0.0
        %v940 = vadd.f32 %v938, %v939
        %v941 = vsel %vm284, %v868, 0.0
        %v942 = vadd.f32 %v940, %v941
        %v943 = vsel %vm284, %v869, 0.0
        %v944 = vadd.f32 %v942, %v943
        %v945 = vsel %vm284, %v870, 0.0
        %v946 = vadd.f32 %v944, %v945
        %v947 = vsel %vm284, %v871, 0.0
        %v948 = vadd.f32 %v946, %v947
        %v949 = vsel %vm284, %v872, 0.0
        %v950 = vadd.f32 %v948, %v949
        %v951 = vsel %vm284, %v873, 0.0
        %v952 = vadd.f32 %v950, %v951
        %v953 = vsel %vm284, %v874, 0.0
        %v954 = vadd.f32 %v952, %v953
        %v955 = vsel %vm284, %v875, 0.0
        %v956 = vadd.f32 %v954, %v955
        %v957 = vsel %vm284, %v876, 0.0
        %v958 = vadd.f32 %v956, %v957
        %v959 = vsel %vm284, %v877, 0.0
        %v960 = vadd.f32 %v958, %v959
        %v961 = vsel %vm284, %v878, 0.0
        %v962 = vadd.f32 %v960, %v961
        %v963 = vsel %vm284, %v879, 0.0
        %v964 = vadd.f32 %v962, %v963
        %v965 = vsel %vm284, %v880, 0.0
        %v966 = vadd.f32 %v964, %v965
        %v967 = vsel %vm284, %v881, 0.0
        %v968 = vadd.f32 %v966, %v967
        %v969 = vsel %vm284, %v882, 0.0
        %v970 = vadd.f32 %v968, %v969
        %v971 = vsel %vm284, %v883, 0.0
        %v972 = vadd.f32 %v970, %v971
        %v973 = vsel %vm284, %v884, 0.0
        %v974 = vadd.f32 %v972, %v973
        %v975 = vsel %vm284, %v885, 0.0
        %v976 = vadd.f32 %v974, %v975
        %v977 = vsel %vm284, %v886, 0.0
        %v978 = vadd.f32 %v976, %v977
        %v979 = vsel %vm284, %v887, 0.0
        %v980 = vadd.f32 %v978, %v979
        %v981 = vsel %vm284, %v888, 0.0
        %v982 = vadd.f32 %v980, %v981
        %v983 = vsel %vm284, %v889, 0.0
        %v984 = vadd.f32 %v982, %v983
        %v985 = vrot.slane %v984, 4
        %v986 = vadd.f32 %v984, %v985
        %v987 = vrot.slane %v986, 2
        %v988 = vadd.f32 %v986, %v987
        %v989 = vrot.slane %v988, 1
        %v990 = vadd.f32 %v988, %v989
        %v991 = vsel %vm284, %v890, 0.0
        %v992 = vsel %vm284, %v891, 0.0
        %v993 = vadd.f32 %v991, %v992
        %v994 = vsel %vm284, %v892, 0.0
        %v995 = vadd.f32 %v993, %v994
        %v996 = vsel %vm284, %v893, 0.0
        %v997 = vadd.f32 %v995, %v996
        %v998 = vsel %vm284, %v894, 0.0
        %v999 = vadd.f32 %v997, %v998
        %v1000 = vsel %vm284, %v895, 0.0
        %v1001 = vadd.f32 %v999, %v1000
        %v1002 = vsel %vm284, %v896, 0.0
        %v1003 = vadd.f32 %v1001, %v1002
        %v1004 = vsel %vm284, %v897, 0.0
        %v1005 = vadd.f32 %v1003, %v1004
        %v1006 = vsel %vm284, %v898, 0.0
        %v1007 = vadd.f32 %v1005, %v1006
        %v1008 = vsel %vm284, %v899, 0.0
        %v1009 = vadd.f32 %v1007, %v1008
        %v1010 = vsel %vm284, %v900, 0.0
        %v1011 = vadd.f32 %v1009, %v1010
        %v1012 = vsel %vm284, %v901, 0.0
        %v1013 = vadd.f32 %v1011, %v1012
        %v1014 = vsel %vm284, %v902, 0.0
        %v1015 = vadd.f32 %v1013, %v1014
        %v1016 = vsel %vm284, %v903, 0.0
        %v1017 = vadd.f32 %v1015, %v1016
        %v1018 = vsel %vm284, %v904, 0.0
        %v1019 = vadd.f32 %v1017, %v1018
        %v1020 = vsel %vm284, %v905, 0.0
        %v1021 = vadd.f32 %v1019, %v1020
        %v1022 = vsel %vm284, %v906, 0.0
        %v1023 = vadd.f32 %v1021, %v1022
        %v1024 = vsel %vm284, %v907, 0.0
        %v1025 = vadd.f32 %v1023, %v1024
        %v1026 = vsel %vm284, %v908, 0.0
        %v1027 = vadd.f32 %v1025, %v1026
        %v1028 = vsel %vm284, %v909, 0.0
        %v1029 = vadd.f32 %v1027, %v1028
        %v1030 = vsel %vm284, %v910, 0.0
        %v1031 = vadd.f32 %v1029, %v1030
        %v1032 = vsel %vm284, %v911, 0.0
        %v1033 = vadd.f32 %v1031, %v1032
        %v1034 = vsel %vm284, %v912, 0.0
        %v1035 = vadd.f32 %v1033, %v1034
        %v1036 = vsel %vm284, %v913, 0.0
        %v1037 = vadd.f32 %v1035, %v1036
        %v1038 = vsel %vm284, %v914, 0.0
        %v1039 = vadd.f32 %v1037, %v1038
        %v1040 = vsel %vm284, %v915, 0.0
        %v1041 = vadd.f32 %v1039, %v1040
        %v1042 = vsel %vm284, %v916, 0.0
        %v1043 = vadd.f32 %v1041, %v1042
        %v1044 = vsel %vm284, %v917, 0.0
        %v1045 = vadd.f32 %v1043, %v1044
        %v1046 = vsel %vm284, %v918, 0.0
        %v1047 = vadd.f32 %v1045, %v1046
        %v1048 = vsel %vm284, %v919, 0.0
        %v1049 = vadd.f32 %v1047, %v1048
        %v1050 = vsel %vm284, %v920, 0.0
        %v1051 = vadd.f32 %v1049, %v1050
        %v1052 = vsel %vm284, %v921, 0.0
        %v1053 = vadd.f32 %v1051, %v1052
        %v1054 = vrot.slane %v1053, 4
        %v1055 = vadd.f32 %v1053, %v1054
        %v1056 = vrot.slane %v1055, 2
        %v1057 = vadd.f32 %v1055, %v1056
        %v1058 = vrot.slane %v1057, 1
        %v1059 = vadd.f32 %v1057, %v1058
        %v1060 = vsub.f32 %v990, %v757
        %v1061 = vsub.f32 %v1059, %v758
        %v1062 = vsel %vm284, %v1060, 0.0
        %v1063 = vsel %vm284, %v1061, 0.0
        %v1064 = vadd.f32 %v1062, %v1063
        %vm1065 = vcmask 122880
        %1066 = vst.msk [vmem:[%s196] sm:$0x1] %vm1065, %v1064
        %s1067 = sand.u32 %s105, 1
        %s1068 = scalar_lea.sflag [#allocation3], %s1067
        %s1069 = sand.u32 %s105, 1
        %s1070 = scalar_lea.vmem [#allocation2], %s1069
        // Predicated region
        $region29: #{tpu_custom_call.1} parent=27 // pred_check
          %p1071 = pneg %p115
        $region30: #{tpu_custom_call.1} parent=27 // pred_check_branch
          %1073 = sbr.rel (%p1071) target = $region32
        $region31: #{tpu_custom_call.1} parent=27 // pred_region
          %s1074 = sadd.s32 %s21, %s22
          %1076 = vsyncadd %s1068, 0
          %s1077 = sadd.s32 %s23, %s1074
          %s1078 = scalar_lea.hbm %s2, %s1077
          %s1080 = sshll.u32 %s1070, 4
          %s1081 = int_to_ptr.vmem [resolvable:$true] %s1080
          %s1082 = sshll.u32 %s1078, 4
          %s1083 = int_to_ptr.hbm [resolvable:$true] %s1082
          %1085 = dma.vmem_to_hbm [thread:$0]  %s1081, 16, %s1083, %s1068
        $region32: #{tpu_custom_call.1} parent=27 // pred_fallthru
          _
      $region28: #{tpu_custom_call.1} parent=5 // pred_fallthru
        _
      %p1086 = scmp.le.s32.totalorder 2, %s11
      // Predicated region
      $region33: #{tpu_custom_call.1} parent=5 // pred_check
        %p1087 = pneg %p1086
      $region34: #{tpu_custom_call.1} parent=5 // pred_check_branch
        %1089 = sbr.rel (%p1087) target = $region36
      $region35: #{tpu_custom_call.1} parent=5 // pred_region
        %s1090 = ssub.s32 %s11, 2
        // Predicated region
        $region37: #{tpu_custom_call.1} parent=35 // pred_check
          %p1091 = pneg %p121
        $region38: #{tpu_custom_call.1} parent=35 // pred_check_branch
          %1093 = sbr.rel (%p1091) target = $region40
        $region39: #{tpu_custom_call.1} parent=35 // pred_region
          %s1094 = sand.u32 %s106, 1
          %s1095 = scalar_lea.sflag [#allocation3], %s1094
          %s1096 = sand.u32 %s106, 1
          %s1097 = scalar_lea.vmem [#allocation2], %s1096
          %1099 = dma.done %s1095, 16
        $region40: #{tpu_custom_call.1} parent=35 // pred_fallthru
          _
      $region36: #{tpu_custom_call.1} parent=5 // pred_fallthru
        _
    $region6: #{tpu_custom_call.1} parent=1 // loop_footer
      %s15 = sadd.s32 1, %s11
    $region7: #{tpu_custom_call.1} parent=1 // loop_footer_branch
      %10 = sbr.rel target = $region3
    $region8: #{tpu_custom_call.1} parent=1 // loop_exit
      _
    %1100 = vsyncpa [#allocation3], 1
    %s1101 = scalar_lea.sflag [#allocation3], 1
    %1102 = vsyncpa %s1101, 1

</llo_original>
